<compile_context>
chip_gen: v5e
topology: v5e:2x2
jax: 0.10.0
libtpu: 0.0.40
codegen_flags: <defaults>
</compile_context>

<pallas_src>
import functools

import jax
import jax.numpy as jnp
from jax.experimental import pallas as pl
from jax.experimental.pallas import tpu as pltpu


def _conv1x1_kernel(w_ref, b_ref, x_ref, o_ref):
    """Per-pixel 3->3 channel mix on dense (TR, L) slabs.

    w_ref : (3, 3) SMEM   (C_out, C_in)
    b_ref : (3,)   SMEM
    x_ref : (TB, 3, TR, L) VMEM
    o_ref : (TB, 3, TR, L) VMEM
    """
    # Hoist the 12 scalar parameter reads out of the unrolled channel loop.
    w = [[w_ref[o, i] for i in range(3)] for o in range(3)]
    b = [b_ref[o] for o in range(3)]
    x0 = x_ref[:, 0, :, :]
    x1 = x_ref[:, 1, :, :]
    x2 = x_ref[:, 2, :, :]
    for co in range(3):  # statically unrolled: 9 dense VPU FMAs + 3 bias adds
        acc = w[co][0] * x0 + w[co][1] * x1 + w[co][2] * x2 + b[co]
        o_ref[:, co, :, :] = acc.astype(o_ref.dtype)


def _pick_lane_width(hw):
    for lane in (512, 256, 128):
        if hw % lane == 0:
            return lane
    # Rare fallback: H*W not a multiple of 128.  A full-extent lane block is
    # always legal (one spatial block per image).
    # TODO(synk): for huge images with H*W % 128 != 0 this single full-extent
    # block could exceed VMEM; such shapes are not expected for this model.
    return hw


def _target_block_bytes():
    # Keep the pipelined footprint (2 input + 2 output buffers = 4x block)
    # comfortably under the scoped-VMEM default on every chip.
    try:
        vmem = pltpu.get_tpu_info().vmem_capacity_bytes
    except Exception:
        vmem = 64 << 20
    return max(1 << 20, min(3 << 20, vmem // 32))


def _choose_tiles(n, r, lane, itemsize, block_bytes):
    """Pick (TB, TR): batch block and row block (multiple of 8, or full r)."""
    per_image = 3 * r * lane * itemsize
    if per_image <= block_bytes:
        tr = r                                    # whole spatial plane
        tb = min(n, max(1, block_bytes // per_image))
    else:
        tb = 1
        rows = max(1, block_bytes // (3 * lane * itemsize))
        if rows >= r:
            tr = r
        else:
            tr = min(r, max(8, (rows // 8) * 8))  # sublane-aligned row block
    # Keep >=2 grid steps along a parallel axis when possible: v7x has two
    # TensorCores sharding "parallel" grid dimensions.
    if pl.cdiv(n, tb) * pl.cdiv(r, tr) < 2:
        if n >= 2:
            tb = -(-n // 2)                       # ceil(n/2) -> 2 batch steps
        elif r > 8:
            tr = ((-(-r // 2)) + 7) // 8 * 8      # split rows, 8-aligned
    return tb, tr


@jax.jit
def generator_forward(x_nchw, weight, bias):
    """Forward pass of Generator: 1x1 conv (3->3 channels); blocks are identity.

    x_nchw : (N, 3, H, W) float32
    weight : (3, 3, 1, 1) float32  (PyTorch Conv2d weight layout)
    bias   : (3,) float32
    """
    n, c, h, w = x_nchw.shape
    assert c == 3
    hw = h * w
    itemsize = jnp.dtype(x_nchw.dtype).itemsize

    lane = _pick_lane_width(hw)
    r = hw // lane
    tb, tr = _choose_tiles(n, r, lane, itemsize, _target_block_bytes())

    # (N, 3, H, W) -> (N, 3, R, L): contiguous reshape, no transpose, no pad.
    x4 = x_nchw.reshape(n, 3, r, lane)
    w2d = weight.reshape(3, 3).astype(jnp.float32)
    b1d = bias.reshape(3).astype(jnp.float32)

    grid = (pl.cdiv(n, tb), pl.cdiv(r, tr))
    cost = pl.CostEstimate(
        flops=18 * n * hw,                                   # 9 mul + 9 add / pixel
        transcendentals=0,
        bytes_accessed=2 * n * 3 * hw * itemsize + 12 * 4,   # in + out + params
    )

    out4 = pl.pallas_call(
        _conv1x1_kernel,
        out_shape=jax.ShapeDtypeStruct((n, 3, r, lane), x_nchw.dtype),
        grid_spec=pltpu.PrefetchScalarGridSpec(
            num_scalar_prefetch=0,
            grid=grid,
            in_specs=[
                pl.BlockSpec(memory_space=pltpu.MemorySpace.SMEM),   # weight (3,3)
                pl.BlockSpec(memory_space=pltpu.MemorySpace.SMEM),   # bias (3,)
                pl.BlockSpec((tb, 3, tr, lane), lambda i, j: (i, 0, j, 0)),
            ],
            out_specs=pl.BlockSpec((tb, 3, tr, lane), lambda i, j: (i, 0, j, 0)),
        ),
        compiler_params=pltpu.CompilerParams(
            dimension_semantics=("parallel", "parallel")),
        cost_estimate=cost,
    )(w2d, b1d, x4)

    # CurveBlock / HSLBlock are identity ops; nothing to emit.
    return out4.reshape(n, 3, h, w)


def _init_params(key):
    """Deterministic Conv2d(3, 3, k=1) params (PyTorch-style uniform init)."""
    kw, kb = jax.random.split(key)
    fan_in = 3 * 1 * 1
    bound = 1.0 / (fan_in ** 0.5)
    weight = jax.random.uniform(kw, (3, 3, 1, 1), jnp.float32, -bound, bound)
    bias = jax.random.uniform(kb, (3,), jnp.float32, -bound, bound)
    return weight, bias


if __name__ == "__main__":
    key = jax.random.PRNGKey(0)
    k_x, k_p = jax.random.split(key)

    # Small NCHW input consistent with the module: batch=2, channels=3, 16x16.
    x = jax.random.normal(k_x, (2, 3, 16, 16), jnp.float32)
    weight, bias = _init_params(k_p)

    out = jax.block_until_ready(generator_forward(x, weight, bias))

    # Sanity check against a plain-JAX reference of the 1x1 conv.
    ref = jnp.einsum("oi,nihw->nohw", weight.reshape(3, 3), x) + bias.reshape(1, 3, 1, 1)
    assert out.shape == x.shape
    assert jnp.allclose(out, ref, atol=1e-5, rtol=1e-5)

    print("KERNEL_OK")
</pallas_src>

<mosaic_0001>
module attributes {stable_mosaic.version = 11 : i64} {
  func.func @_conv1x1_kernel(%arg0: i32, %arg1: i32, %arg2: memref<3x3xf32, #tpu.memory_space<smem>>, %arg3: memref<3xf32, #tpu.memory_space<smem>>, %arg4: memref<1x3x1x256xf32, #tpu.memory_space<vmem>>, %arg5: memref<1x3x1x256xf32, #tpu.memory_space<vmem>>) attributes {dimension_semantics = [#tpu.dimension_semantics<parallel>, #tpu.dimension_semantics<parallel>], iteration_bounds = array<i64: 2, 1>, scalar_prefetch = 0 : i64, scratch_operands = 0 : i64, tpu.core_type = #tpu.core_type<tc>, window_params = [{transform_indices = @transform_0, window_bounds = array<i64: 3, 3>}, {transform_indices = @transform_1, window_bounds = array<i64: 3>}, {transform_indices = @transform_2, window_bounds = array<i64: 1, 3, 1, 256>}, {transform_indices = @transform_3, window_bounds = array<i64: 1, 3, 1, 256>}]} {
    %c0 = arith.constant 0 : index
    %c0_0 = arith.constant 0 : index
    %0 = memref.load %arg2[%c0, %c0_0] : memref<3x3xf32, #tpu.memory_space<smem>>
    %c0_1 = arith.constant 0 : index
    %c1 = arith.constant 1 : index
    %1 = memref.load %arg2[%c0_1, %c1] : memref<3x3xf32, #tpu.memory_space<smem>>
    %c0_2 = arith.constant 0 : index
    %c2 = arith.constant 2 : index
    %2 = memref.load %arg2[%c0_2, %c2] : memref<3x3xf32, #tpu.memory_space<smem>>
    %c1_3 = arith.constant 1 : index
    %c0_4 = arith.constant 0 : index
    %3 = memref.load %arg2[%c1_3, %c0_4] : memref<3x3xf32, #tpu.memory_space<smem>>
    %c1_5 = arith.constant 1 : index
    %c1_6 = arith.constant 1 : index
    %4 = memref.load %arg2[%c1_5, %c1_6] : memref<3x3xf32, #tpu.memory_space<smem>>
    %c1_7 = arith.constant 1 : index
    %c2_8 = arith.constant 2 : index
    %5 = memref.load %arg2[%c1_7, %c2_8] : memref<3x3xf32, #tpu.memory_space<smem>>
    %c2_9 = arith.constant 2 : index
    %c0_10 = arith.constant 0 : index
    %6 = memref.load %arg2[%c2_9, %c0_10] : memref<3x3xf32, #tpu.memory_space<smem>>
    %c2_11 = arith.constant 2 : index
    %c1_12 = arith.constant 1 : index
    %7 = memref.load %arg2[%c2_11, %c1_12] : memref<3x3xf32, #tpu.memory_space<smem>>
    %c2_13 = arith.constant 2 : index
    %c2_14 = arith.constant 2 : index
    %8 = memref.load %arg2[%c2_13, %c2_14] : memref<3x3xf32, #tpu.memory_space<smem>>
    %c0_15 = arith.constant 0 : index
    %9 = memref.load %arg3[%c0_15] : memref<3xf32, #tpu.memory_space<smem>>
    %c1_16 = arith.constant 1 : index
    %10 = memref.load %arg3[%c1_16] : memref<3xf32, #tpu.memory_space<smem>>
    %c2_17 = arith.constant 2 : index
    %11 = memref.load %arg3[%c2_17] : memref<3xf32, #tpu.memory_space<smem>>
    %c0_18 = arith.constant 0 : index
    %c0_19 = arith.constant 0 : index
    %c0_20 = arith.constant 0 : index
    %c0_21 = arith.constant 0 : index
    %12 = vector.load %arg4[%c0_18, %c0_19, %c0_20, %c0_21] : memref<1x3x1x256xf32, #tpu.memory_space<vmem>>, vector<1x1x1x256xf32>
    %13 = vector.shape_cast %12 : vector<1x1x1x256xf32> to vector<1x1x256xf32>
    %c0_22 = arith.constant 0 : index
    %c1_23 = arith.constant 1 : index
    %c0_24 = arith.constant 0 : index
    %c0_25 = arith.constant 0 : index
    %14 = vector.load %arg4[%c0_22, %c1_23, %c0_24, %c0_25] : memref<1x3x1x256xf32, #tpu.memory_space<vmem>>, vector<1x1x1x256xf32>
    %15 = vector.shape_cast %14 : vector<1x1x1x256xf32> to vector<1x1x256xf32>
    %c0_26 = arith.constant 0 : index
    %c2_27 = arith.constant 2 : index
    %c0_28 = arith.constant 0 : index
    %c0_29 = arith.constant 0 : index
    %16 = vector.load %arg4[%c0_26, %c2_27, %c0_28, %c0_29] : memref<1x3x1x256xf32, #tpu.memory_space<vmem>>, vector<1x1x1x256xf32>
    %17 = vector.shape_cast %16 : vector<1x1x1x256xf32> to vector<1x1x256xf32>
    %18 = vector.broadcast %0 : f32 to vector<1x1x256xf32>
    %19 = arith.mulf %18, %13 : vector<1x1x256xf32>
    %20 = vector.broadcast %1 : f32 to vector<1x1x256xf32>
    %21 = arith.mulf %20, %15 : vector<1x1x256xf32>
    %22 = arith.addf %19, %21 : vector<1x1x256xf32>
    %23 = vector.broadcast %2 : f32 to vector<1x1x256xf32>
    %24 = arith.mulf %23, %17 : vector<1x1x256xf32>
    %25 = arith.addf %22, %24 : vector<1x1x256xf32>
    %26 = vector.broadcast %9 : f32 to vector<1x1x256xf32>
    %27 = arith.addf %25, %26 : vector<1x1x256xf32>
    %c0_30 = arith.constant 0 : index
    %c0_31 = arith.constant 0 : index
    %c0_32 = arith.constant 0 : index
    %c0_33 = arith.constant 0 : index
    %28 = vector.load %arg5[%c0_30, %c0_31, %c0_32, %c0_33] : memref<1x3x1x256xf32, #tpu.memory_space<vmem>>, vector<1x1x1x256xf32>
    %29 = vector.shape_cast %28 : vector<1x1x1x256xf32> to vector<1x1x256xf32>
    %30 = vector.shape_cast %27 : vector<1x1x256xf32> to vector<1x1x1x256xf32>
    tpu.vector_store %arg5[%c0_30, %c0_31, %c0_32, %c0_33], %30 {strides = array<i32>} : memref<1x3x1x256xf32, #tpu.memory_space<vmem>>, vector<1x1x1x256xf32>,
    %31 = vector.broadcast %3 : f32 to vector<1x1x256xf32>
    %32 = arith.mulf %31, %13 : vector<1x1x256xf32>
    %33 = vector.broadcast %4 : f32 to vector<1x1x256xf32>
    %34 = arith.mulf %33, %15 : vector<1x1x256xf32>
    %35 = arith.addf %32, %34 : vector<1x1x256xf32>
    %36 = vector.broadcast %5 : f32 to vector<1x1x256xf32>
    %37 = arith.mulf %36, %17 : vector<1x1x256xf32>
    %38 = arith.addf %35, %37 : vector<1x1x256xf32>
    %39 = vector.broadcast %10 : f32 to vector<1x1x256xf32>
    %40 = arith.addf %38, %39 : vector<1x1x256xf32>
    %c0_34 = arith.constant 0 : index
    %c1_35 = arith.constant 1 : index
    %c0_36 = arith.constant 0 : index
    %c0_37 = arith.constant 0 : index
    %41 = vector.load %arg5[%c0_34, %c1_35, %c0_36, %c0_37] : memref<1x3x1x256xf32, #tpu.memory_space<vmem>>, vector<1x1x1x256xf32>
    %42 = vector.shape_cast %41 : vector<1x1x1x256xf32> to vector<1x1x256xf32>
    %43 = vector.shape_cast %40 : vector<1x1x256xf32> to vector<1x1x1x256xf32>
    tpu.vector_store %arg5[%c0_34, %c1_35, %c0_36, %c0_37], %43 {strides = array<i32>} : memref<1x3x1x256xf32, #tpu.memory_space<vmem>>, vector<1x1x1x256xf32>,
    %44 = vector.broadcast %6 : f32 to vector<1x1x256xf32>
    %45 = arith.mulf %44, %13 : vector<1x1x256xf32>
    %46 = vector.broadcast %7 : f32 to vector<1x1x256xf32>
    %47 = arith.mulf %46, %15 : vector<1x1x256xf32>
    %48 = arith.addf %45, %47 : vector<1x1x256xf32>
    %49 = vector.broadcast %8 : f32 to vector<1x1x256xf32>
    %50 = arith.mulf %49, %17 : vector<1x1x256xf32>
    %51 = arith.addf %48, %50 : vector<1x1x256xf32>
    %52 = vector.broadcast %11 : f32 to vector<1x1x256xf32>
    %53 = arith.addf %51, %52 : vector<1x1x256xf32>
    %c0_38 = arith.constant 0 : index
    %c2_39 = arith.constant 2 : index
    %c0_40 = arith.constant 0 : index
    %c0_41 = arith.constant 0 : index
    %54 = vector.load %arg5[%c0_38, %c2_39, %c0_40, %c0_41] : memref<1x3x1x256xf32, #tpu.memory_space<vmem>>, vector<1x1x1x256xf32>
    %55 = vector.shape_cast %54 : vector<1x1x1x256xf32> to vector<1x1x256xf32>
    %56 = vector.shape_cast %53 : vector<1x1x256xf32> to vector<1x1x1x256xf32>
    tpu.vector_store %arg5[%c0_38, %c2_39, %c0_40, %c0_41], %56 {strides = array<i32>} : memref<1x3x1x256xf32, #tpu.memory_space<vmem>>, vector<1x1x1x256xf32>,
    return
  }
  func.func @transform_0(%arg0: i32, %arg1: i32) -> (i32, i32) {
    %c0_i32 = arith.constant 0 : i32
    %c0_i32_0 = arith.constant 0 : i32
    %c0_i32_1 = arith.constant 0 : i32
    return %c0_i32, %c0_i32_0 : i32, i32
  }
  func.func @transform_1(%arg0: i32, %arg1: i32) -> i32 {
    %c0_i32 = arith.constant 0 : i32
    %c0_i32_0 = arith.constant 0 : i32
    return %c0_i32 : i32
  }
  func.func @transform_2(%arg0: i32, %arg1: i32) -> (i32, i32, i32, i32) {
    %c0_i32 = arith.constant 0 : i32
    %c0_i32_0 = arith.constant 0 : i32
    %c0_i32_1 = arith.constant 0 : i32
    return %arg0, %c0_i32, %arg1, %c0_i32_0 : i32, i32, i32, i32
  }
  func.func @transform_3(%arg0: i32, %arg1: i32) -> (i32, i32, i32, i32) {
    %c0_i32 = arith.constant 0 : i32
    %c0_i32_0 = arith.constant 0 : i32
    %c0_i32_1 = arith.constant 0 : i32
    return %arg0, %c0_i32, %arg1, %c0_i32_0 : i32, i32, i32, i32
  }
}

</mosaic_0001>

<llo_original>
// kernel: generator_forward.1
$region0: #{generator_forward.1}
  #allocation0 [shape = 'u32[]', space=smem, size = 0x4, offset = 0x4, fixed_abs, tag = 'smem constant byte address 0x4 - core index']
  #allocation1 [shape = 'u32[72,128]{1,0:T(1,128)}', space=vmem, size = 0x9000, scoped, tag = 'internal scratch']
  %s0 = inlined_call_operand.vmem [shape: f32[3,3], index: 0, kind: input, shape index: {}]
  %s1 = inlined_call_operand.vmem [shape: f32[3], index: 1, kind: input, shape index: {}]
  %s2 = inlined_call_operand.vmem [shape: f32[2,3,1,256], index: 2, kind: input, shape index: {}]
  %s3 = inlined_call_operand.vmem [shape: f32[2,3,1,256], index: 3, kind: output, shape index: {}]
  %s4 = sld [smem:[#allocation0]]
  $region53: #{generator_forward.1} parent=0
    _
  %s6 = ssub.s32 1, %s4
  %s7 = scalar_select 0, %s6, %s4
  $region1: #{generator_forward.1} parent=0
    #allocation2 [shape = 'u8[2048]{0}', space=smem, size = 0x800, scoped, tag = 'input window, operand 0, single buffered']
    #allocation3 [shape = 's32[2]{0}', space=sflag, size = 0x8, scoped, tag = 'scoped memory for generator_forward.1']
    #allocation4 [shape = 'u8[512]{0}', space=smem, size = 0x200, scoped, tag = 'input window, operand 1, single buffered']
    #allocation5 [shape = 's32[1]{0}', space=sflag, size = 0x4, scoped, tag = 'scoped memory for generator_forward.1']
    %8 = vsyncpa [#allocation3], 0
    %9 = vsyncpa [#allocation5], 0
    loop: start=0, step=1, limit=4
    $region2: #{generator_forward.1} parent=1 // loop_pre_header
      _
    $region3: #{generator_forward.1} parent=1 // loop_header
      %s11 = sphi 0, %s15
      %p12 = scmp.ge.s32.totalorder %s11, 4
      %s18 = sphi 0, %s30
      %s19 = sphi 0, %s26
      %s20 = sphi 0, %s18
      %s21 = sphi 0, %s19
      %s22 = sphi 0, %s20
      %s23 = sphi 0, %s21
      %s31 = sphi 0, %s31
      %s33 = sphi 0, %s31
      %s34 = sphi 0, %s33
      %s48 = sphi 0, %s34
      %s52 = sphi 0, %s52
      %s54 = sphi 0, %s52
      %s55 = sphi 0, %s54
      %s69 = sphi 0, %s55
      %s77 = sphi 0, %s79
      %s80 = sphi 0, %s77
      %s81 = sphi 0, %s80
      %s97 = sphi 0, %s81
      %s105 = sphi 0, %s107
      %s108 = sphi 0, %s105
      %s109 = sphi 0, %s108
      %s125 = sphi 0, %s109
    $region4: #{generator_forward.1} parent=1 // loop_header_branch
      %14 = sbr.rel (%p12) target = $region8
    $region5: #{generator_forward.1} parent=1 // loop_body
      %s16 = ssub.s32 %s11, 1
      %s17 = ssub.s32 %s11, 2
      %s24 = sadd.s32 1, %s19
      %p25 = scmp.ge.s32.totalorder %s24, 1
      %s26 = scalar_select %p25, 0, %s24
      %s27 = sadd.s32 1, %s18
      %s28 = scalar_select %p25, %s27, %s18
      %p29 = scmp.ge.s32.totalorder %s28, 2
      %s30 = scalar_select %p29, 0, %s28
      %s32 = sadd.s32 %s31, 1
      %p35 = scmp.eq.s32.totalorder %s11, 1
      %p36 = scmp.ne.s32.totalorder %s31, %s33
      %p37 = scmp.eq.s32.totalorder %s11, 0
      %p38 = por %p36, %p37
      %p39 = scmp.ne.s32.totalorder %s31, %s33
      %p40 = scmp.eq.s32.totalorder %s16, 1
      %p41 = por %p39, %p40
      %p42 = scmp.ne.s32.totalorder %s33, %s34
      %p43 = scmp.eq.s32.totalorder %s16, 0
      %p44 = por %p42, %p43
      %p45 = scmp.ne.s32.totalorder %s33, %s34
      %p46 = scmp.eq.s32.totalorder %s17, 1
      %p47 = por %p45, %p46
      %p49 = scmp.ne.s32.totalorder %s34, %s48
      %p50 = scmp.eq.s32.totalorder %s17, 0
      %p51 = por %p49, %p50
      %s53 = sadd.s32 %s52, 1
      %p56 = scmp.eq.s32.totalorder %s11, 1
      %p57 = scmp.ne.s32.totalorder %s52, %s54
      %p58 = scmp.eq.s32.totalorder %s11, 0
      %p59 = por %p57, %p58
      %p60 = scmp.ne.s32.totalorder %s52, %s54
      %p61 = scmp.eq.s32.totalorder %s16, 1
      %p62 = por %p60, %p61
      %p63 = scmp.ne.s32.totalorder %s54, %s55
      %p64 = scmp.eq.s32.totalorder %s16, 0
      %p65 = por %p63, %p64
      %p66 = scmp.ne.s32.totalorder %s54, %s55
      %p67 = scmp.eq.s32.totalorder %s17, 1
      %p68 = por %p66, %p67
      %p70 = scmp.ne.s32.totalorder %s55, %s69
      %p71 = scmp.eq.s32.totalorder %s17, 0
      %p72 = por %p70, %p71
      %s73 = ssub.s32 %s18, %s30
      %s74 = ssub.s32 %s19, %s26
      %s75 = sor.u32 %s73, %s74
      %p76 = scmp.eq.s32.totalorder %s75, 0
      %s78 = sadd.s32 %s77, 1
      %s79 = scalar_select %p76, %s77, %s78
      %p82 = pneg %p76
      %p83 = scmp.eq.s32.totalorder %s11, 1
      %p84 = por %p82, %p83
      %p85 = scmp.ne.s32.totalorder %s77, %s80
      %p86 = scmp.eq.s32.totalorder %s11, 0
      %p87 = por %p85, %p86
      %p88 = scmp.ne.s32.totalorder %s77, %s80
      %p89 = scmp.eq.s32.totalorder %s16, 1
      %p90 = por %p88, %p89
      %p91 = scmp.ne.s32.totalorder %s80, %s81
      %p92 = scmp.eq.s32.totalorder %s16, 0
      %p93 = por %p91, %p92
      %p94 = scmp.ne.s32.totalorder %s80, %s81
      %p95 = scmp.eq.s32.totalorder %s17, 1
      %p96 = por %p94, %p95
      %p98 = scmp.ne.s32.totalorder %s81, %s97
      %p99 = scmp.eq.s32.totalorder %s17, 0
      %p100 = por %p98, %p99
      %s101 = ssub.s32 %s18, %s30
      %s102 = ssub.s32 %s19, %s26
      %s103 = sor.u32 %s101, %s102
      %p104 = scmp.eq.s32.totalorder %s103, 0
      %s106 = sadd.s32 %s105, 1
      %s107 = scalar_select %p104, %s105, %s106
      %p110 = pneg %p104
      %p111 = scmp.eq.s32.totalorder %s11, 1
      %p112 = por %p110, %p111
      %p113 = scmp.ne.s32.totalorder %s105, %s108
      %p114 = scmp.eq.s32.totalorder %s11, 0
      %p115 = por %p113, %p114
      %p116 = scmp.ne.s32.totalorder %s105, %s108
      %p117 = scmp.eq.s32.totalorder %s16, 1
      %p118 = por %p116, %p117
      %p119 = scmp.ne.s32.totalorder %s108, %s109
      %p120 = scmp.eq.s32.totalorder %s16, 0
      %p121 = por %p119, %p120
      %p122 = scmp.ne.s32.totalorder %s108, %s109
      %p123 = scmp.eq.s32.totalorder %s17, 1
      %p124 = por %p122, %p123
      %p126 = scmp.ne.s32.totalorder %s109, %s125
      %p127 = scmp.eq.s32.totalorder %s17, 0
      %p128 = por %p126, %p127
      %p129 = scmp.le.s32.totalorder 1, %s11
      %p130 = scmp.lt.s32.totalorder %s11, 3
      %p131 = pnand %p129, %p130
      %p132 = pneg %p131
      // Predicated region
      $region9: #{generator_forward.1} parent=5 // pred_check
        _
      $region10: #{generator_forward.1} parent=5 // pred_check_branch
        %134 = sbr.rel (%p131) target = $region12
      $region11: #{generator_forward.1} parent=5 // pred_region
        %s135 = ssub.s32 %s11, 1
        // Predicated region
        $region13: #{generator_forward.1} parent=11 // pred_check
          %p136 = pneg %p44
        $region14: #{generator_forward.1} parent=11 // pred_check_branch
          %138 = sbr.rel (%p136) target = $region16
        $region15: #{generator_forward.1} parent=11 // pred_region
          %140 = vsyncadd [#allocation3], 0
          %s142 = sshll.u32 %s0, 4
          %s143 = int_to_ptr.vmem [resolvable:$true] %s142
          %145 = dma.vmem_to_smem %s143, 64, [#allocation2], [#allocation3]
        $region16: #{generator_forward.1} parent=11 // pred_fallthru
          _
        // Predicated region
        $region17: #{generator_forward.1} parent=11 // pred_check
          %p146 = pneg %p65
        $region18: #{generator_forward.1} parent=11 // pred_check_branch
          %148 = sbr.rel (%p146) target = $region20
        $region19: #{generator_forward.1} parent=11 // pred_region
          %150 = vsyncadd [#allocation5], 0
          %s152 = sshll.u32 %s1, 4
          %s153 = int_to_ptr.vmem [resolvable:$true] %s152
          %155 = dma.vmem_to_smem %s153, 16, [#allocation4], [#allocation5]
        $region20: #{generator_forward.1} parent=11 // pred_fallthru
          _
      $region12: #{generator_forward.1} parent=5 // pred_fallthru
        _
      %p156 = scmp.lt.s32.totalorder %s11, 2
      // Predicated region
      $region21: #{generator_forward.1} parent=5 // pred_check
        %p157 = pneg %p156
      $region22: #{generator_forward.1} parent=5 // pred_check_branch
        %159 = sbr.rel (%p157) target = $region24
      $region23: #{generator_forward.1} parent=5 // pred_region
        // Predicated region
        $region25: #{generator_forward.1} parent=23 // pred_check
          %p160 = pneg %p87
        $region26: #{generator_forward.1} parent=23 // pred_check_branch
          %162 = sbr.rel (%p160) target = $region28
        $region27: #{generator_forward.1} parent=23 // pred_region
          %p163 = scmp.lt.s32.totalorder %s18, 1
          %s164 = scalar_select %p163, %s18, 1
          %p165 = scmp.lt.s32.totalorder %s19, 0
          %s166 = scalar_select %p165, %s19, 0
          %s167 = smul.addr %s166, 2
          %s168 = smul.addr %s164, 6
          %s169 = sadd.s32 %s167, %s168
          %s170 = scalar_lea.vmem %s2, %s169
        $region28: #{generator_forward.1} parent=23 // pred_fallthru
          _
      $region24: #{generator_forward.1} parent=5 // pred_fallthru
        _
      %p171 = scmp.le.s32.totalorder 1, %s11
      %p172 = scmp.lt.s32.totalorder %s11, 3
      %p173 = pnand %p171, %p172
      %p174 = pneg %p173
      // Predicated region
      $region29: #{generator_forward.1} parent=5 // pred_check
        _
      $region30: #{generator_forward.1} parent=5 // pred_check_branch
        %176 = sbr.rel (%p173) target = $region32
      $region31: #{generator_forward.1} parent=5 // pred_region
        %s177 = ssub.s32 %s11, 1
        // Predicated region
        $region33: #{generator_forward.1} parent=31 // pred_check
          %p178 = pneg %p44
        $region34: #{generator_forward.1} parent=31 // pred_check_branch
          %180 = sbr.rel (%p178) target = $region36
        $region35: #{generator_forward.1} parent=31 // pred_region
          %182 = dma.done [#allocation3], 64
        $region36: #{generator_forward.1} parent=31 // pred_fallthru
          _
        // Predicated region
        $region37: #{generator_forward.1} parent=31 // pred_check
          %p183 = pneg %p65
        $region38: #{generator_forward.1} parent=31 // pred_check_branch
          %185 = sbr.rel (%p183) target = $region40
        $region39: #{generator_forward.1} parent=31 // pred_region
          %187 = dma.done [#allocation5], 16
        $region40: #{generator_forward.1} parent=31 // pred_fallthru
          _
        %188 = sfence
        %p189 = pneg %p44
        %p190 = pneg %p41
        %p191 = pneg %p65
        %p192 = pneg %p62
        %p193 = scmp.lt.s32.totalorder %s20, 1
        %s194 = scalar_select %p193, %s20, 1
        %p195 = scmp.lt.s32.totalorder %s21, 0
        %s196 = scalar_select %p195, %s21, 0
        %s197 = smul.addr %s196, 2
        %s198 = smul.addr %s194, 6
        %s199 = sadd.s32 %s197, %s198
        %s200 = scalar_lea.vmem %s2, %s199
        %p201 = pneg %p93
        %p202 = pneg %p90
        %p203 = pneg %p121
        %p204 = pneg %p118
        %p205 = scmp.lt.s32.totalorder %s20, 1
        %s206 = scalar_select %p205, %s20, 1
        %p207 = scmp.lt.s32.totalorder %s21, 0
        %s208 = scalar_select %p207, %s21, 0
        %s209 = smul.addr %s208, 2
        %s210 = smul.addr %s206, 6
        %s211 = sadd.s32 %s209, %s210
        %s212 = scalar_lea.vmem %s3, %s211
        %p213 = scmp.lt.s32.totalorder %s20, 1
        %s214 = scalar_select %p213, %s20, 1
        %p215 = scmp.lt.s32.totalorder %s21, 0
        %s216 = scalar_select %p215, %s21, 0
        %s217 = smul.addr %s216, 2
        %s218 = smul.addr %s214, 6
        %s219 = sadd.s32 %s217, %s218
        %s220 = scalar_lea.vmem %s2, %s219
        %p221 = scmp.lt.s32.totalorder %s20, 1
        %s222 = scalar_select %p221, %s20, 1
        %p223 = scmp.lt.s32.totalorder %s21, 0
        %s224 = scalar_select %p223, %s21, 0
        %s225 = smul.addr %s224, 2
        %s226 = smul.addr %s222, 6
        %s227 = sadd.s32 %s225, %s226
        %s228 = scalar_lea.vmem %s3, %s227
        %s229 = sld [smem:[#allocation2]]
        %s230 = sld [smem:[#allocation2 + $0x1]]
        %s231 = sld [smem:[#allocation2 + $0x2]]
        %s232 = sld [smem:[#allocation2 + $0x80]]
        %s233 = sld [smem:[#allocation2 + $0x81]]
        %s234 = sld [smem:[#allocation2 + $0x82]]
        %s235 = sld [smem:[#allocation2 + $0x100]]
        %s236 = sld [smem:[#allocation2 + $0x101]]
        %s237 = sld [smem:[#allocation2 + $0x102]]
        %s238 = sld [smem:[#allocation4]]
        %s239 = sld [smem:[#allocation4 + $0x1]]
        %s240 = sld [smem:[#allocation4 + $0x2]]
        %v241 = vld [vmem:[%s220] sm:$0x3]
        %s242 = scalar_lea.vmem %s220, 2
        %v243 = vld [vmem:[%s242] sm:$0x3]
        %s244 = scalar_lea.vmem %s220, 4
        %v245 = vld [vmem:[%s244] sm:$0x3]
        %v246 = vstv %s229
        %v247 = vmul.f32 %v246, %v241
        %v248 = vstv %s230
        %v249 = vmul.f32 %v248, %v243
        %v250 = vadd.f32 %v247, %v249
        %v251 = vstv %s231
        %v252 = vmul.f32 %v251, %v245
        %v253 = vadd.f32 %v250, %v252
        %v254 = vstv %s238
        %v255 = vadd.f32 %v253, %v254
        %v256 = vlaneseq
        %vm257 = vcmp.ge.s32.totalorder %v256, 0
        %vm258 = vcmp.lt.s32.totalorder %v256, 256
        %vm259 = vmand %vm257, %vm258
        %260 = vst.msk [vmem:[%s228] sm:$0x3] %vm259, %v255
        %v261 = vstv %s232
        %v262 = vmul.f32 %v261, %v241
        %v263 = vstv %s233
        %v264 = vmul.f32 %v263, %v243
        %v265 = vadd.f32 %v262, %v264
        %v266 = vstv %s234
        %v267 = vmul.f32 %v266, %v245
        %v268 = vadd.f32 %v265, %v267
        %v269 = vstv %s239
        %v270 = vadd.f32 %v268, %v269
        %s271 = scalar_lea.vmem %s228, 2
        %272 = vst.msk [vmem:[%s271] sm:$0x3] %vm259, %v270
        %v273 = vstv %s235
        %v274 = vmul.f32 %v273, %v241
        %v275 = vstv %s236
        %v276 = vmul.f32 %v275, %v243
        %v277 = vadd.f32 %v274, %v276
        %v278 = vstv %s237
        %v279 = vmul.f32 %v278, %v245
        %v280 = vadd.f32 %v277, %v279
        %v281 = vstv %s240
        %v282 = vadd.f32 %v280, %v281
        %s283 = scalar_lea.vmem %s228, 4
        %284 = vst.msk [vmem:[%s283] sm:$0x3] %vm259, %v282
        %p285 = scmp.lt.s32.totalorder %s20, 1
        %s286 = scalar_select %p285, %s20, 1
        %p287 = scmp.lt.s32.totalorder %s21, 0
        %s288 = scalar_select %p287, %s21, 0
        %s289 = smul.addr %s288, 2
        %s290 = smul.addr %s286, 6
        %s291 = sadd.s32 %s289, %s290
        %s292 = scalar_lea.vmem %s3, %s291
        // Predicated region
        $region41: #{generator_forward.1} parent=31 // pred_check
          %p293 = pneg %p118
        $region42: #{generator_forward.1} parent=31 // pred_check_branch
          %295 = sbr.rel (%p293) target = $region44
        $region43: #{generator_forward.1} parent=31 // pred_region
          _
        $region44: #{generator_forward.1} parent=31 // pred_fallthru
          _
      $region32: #{generator_forward.1} parent=5 // pred_fallthru
        _
      %p296 = scmp.le.s32.totalorder 2, %s11
      // Predicated region
      $region45: #{generator_forward.1} parent=5 // pred_check
        %p297 = pneg %p296
      $region46: #{generator_forward.1} parent=5 // pred_check_branch
        %299 = sbr.rel (%p297) target = $region48
      $region47: #{generator_forward.1} parent=5 // pred_region
        %s300 = ssub.s32 %s11, 2
        // Predicated region
        $region49: #{generator_forward.1} parent=47 // pred_check
          %p301 = pneg %p124
        $region50: #{generator_forward.1} parent=47 // pred_check_branch
          %303 = sbr.rel (%p301) target = $region52
        $region51: #{generator_forward.1} parent=47 // pred_region
          %p304 = scmp.lt.s32.totalorder %s22, 1
          %s305 = scalar_select %p304, %s22, 1
          %p306 = scmp.lt.s32.totalorder %s23, 0
          %s307 = scalar_select %p306, %s23, 0
          %s308 = smul.addr %s307, 2
          %s309 = smul.addr %s305, 6
          %s310 = sadd.s32 %s308, %s309
          %s311 = scalar_lea.vmem %s3, %s310
        $region52: #{generator_forward.1} parent=47 // pred_fallthru
          _
      $region48: #{generator_forward.1} parent=5 // pred_fallthru
        _
    $region6: #{generator_forward.1} parent=1 // loop_footer
      %s15 = sadd.s32 1, %s11
    $region7: #{generator_forward.1} parent=1 // loop_footer_branch
      %10 = sbr.rel target = $region3
    $region8: #{generator_forward.1} parent=1 // loop_exit
      _
    %312 = vsyncpa [#allocation3], 1
    %s313 = scalar_lea.sflag [#allocation3], 1
    %314 = vsyncpa %s313, 1
    %315 = vsyncpa [#allocation5], 1

</llo_original>
